<compile_context>
chip_gen: v7x
topology: tpu7x:2x2x1
jax: 0.10.0
libtpu: 0.0.40
codegen_flags: <defaults>
</compile_context>

<pallas_src>
import math

import jax
import jax.numpy as jnp
from jax.experimental import pallas as pl
from jax.experimental.pallas import tpu as pltpu


def _vs_kernel(x_ref, w12_ref, b12_ref, w3_ref, seg_ref, segT_ref, out_ref):
    """One grid step: `bt` whole batches folded onto the lane axis.

    x_ref   : (W, L)    input slab, L = bt * N (f32 or bf16)
    w12_ref : (2D, W)   fused [fc1; fc2] weights (same dtype as x)
    b12_ref : (2D, 1)   fused [fc1; fc2] biases (f32)
    w3_ref  : (1, D)    weight_ffc weight (f32)
    seg_ref : (bt, L)   f32 one-hot segment matrix: seg[b, j] = 1 iff lane j belongs to batch b
    segT_ref: (L, bt)   its transpose (precomputed so every dot is a plain contraction)
    out_ref : (1, 1, L) lane-dense softmax weights for this batch tile
    """
    x = x_ref[...]
    w12 = w12_ref[...]
    d_model = w12.shape[0] // 2

    # GLU: one fused MXU pass for fc1 and fc2 over the whole batch tile.
    h = jnp.dot(w12, x, preferred_element_type=jnp.float32) + b12_ref[...]   # (2D, L)
    g = jax.nn.sigmoid(h[:d_model, :]) * h[d_model:, :]                       # (D, L)

    # TODO(synk): nn.Dropout(0.1) is identity in eval mode; training-mode dropout not implemented.

    # weight_ffc: (1, D) @ (D, L) -> (1, L). Its scalar bias shifts every logit by the same
    # constant and cancels in the softmax -> omitted. (A VPU-mul + sublane-reduce variant
    # would avoid the M=1 MXU pass, but the MXU is idle here, so keep the dot.)
    logits = jnp.dot(w3_ref[...], g, preferred_element_type=jnp.float32)      # (1, L)

    # ---- Segmented softmax over each batch's N lanes ---------------------------------
    seg = seg_ref[...]                                                        # (bt, L)
    # Per-segment max: the only (bt, L)-sized stage (select + reductions); the segment
    # mask is precomputed in the wrapper, so there are no in-kernel iotas / compares.
    z = jnp.where(seg != 0.0, logits, -1e30)                                  # (bt, L)
    seg_max = jnp.max(z, axis=-1, keepdims=True)                              # (bt, 1)
    # Collapse back to a lane-dense row: for lane j only its own batch's row is > -1e29,
    # so the sublane max recovers logits[j] - max(segment(j)) with no relayout/reshape.
    shifted = jnp.max(z - seg_max, axis=0, keepdims=True)                     # (1, L)

    # exp / normalize stay (1, L): EUP and VPU work scale with L, not bt*L.
    e = jnp.exp(shifted)                                                      # (1, L)
    # Per-segment sums + broadcast-back via two small MXU matmuls against the one-hot
    # segment matrix instead of another (bt, L) masked reduce.
    seg_sum = jnp.dot(e, segT_ref[...], preferred_element_type=jnp.float32)   # (1, bt)
    denom = jnp.dot(seg_sum, seg, preferred_element_type=jnp.float32)         # (1, L)

    # EUP reciprocal (free slot) + one Newton step for f32-level accuracy; denom >= 1.
    r = pl.reciprocal(denom, approx=True)
    r = r * (2.0 - denom * r)
    out_ref[0] = e * r                                                        # (1, L)


# Cap on bt*L elements: bounds the f32 segment-mask operands and the single (bt, L) stage.
_MAX_MASK_ELEMS = 1 << 20


def _choose_tiling(B, N, target_lanes=2048):
    """Pick (bt, B_pad): batches per lane-tile and the padded batch count.

    Each grid step processes `bt` whole batches as bt*N lanes. For a multi-tile grid the
    tile's lane width must be a multiple of 128, so bt must be a multiple of
    128 / gcd(N, 128); the batch is padded with dummy batches up to a multiple of bt.
    Preferences (perf review): least padded work, an even tile count >= 2 (v7x has two
    TensorCores; ~12% padding is tolerated to get it), >=512-lane tiles, widest tile.
    """
    step = 128 // math.gcd(N, 128)
    budget_bt = max(step, (target_lanes // max(N, 1)) // step * step)

    cands = []
    if B <= budget_bt and B * B * N <= _MAX_MASK_ELEMS:
        cands.append((B, B, 1))                        # one tile, whole batch, no padding
    for bt in range(step, budget_bt + 1, step):
        if bt * bt * N > _MAX_MASK_ELEMS:
            break
        n_tiles = -(-B // bt)
        if n_tiles < 2:
            continue
        n_tiles += n_tiles % 2                         # even tile count for v7x's 2 TCs
        cands.append((bt, n_tiles * bt, n_tiles))
    if not cands:
        # TODO(synk): very large odd N needs a lane-padded-segment variant of this kernel;
        # fall back to the smallest legal tiling even though the segment mask gets big.
        if B <= budget_bt:
            cands.append((B, B, 1))
        else:
            n_tiles = -(-B // budget_bt)
            n_tiles += n_tiles % 2
            cands.append((budget_bt, n_tiles * budget_bt, n_tiles))

    def key(c):
        bt, b_pad, n_tiles = c
        even = n_tiles >= 2 and n_tiles % 2 == 0
        return (b_pad * (8 if even else 9), 0 if bt * N >= 512 else 1, -bt)

    bt, b_pad, _ = min(cands, key=key)
    return bt, b_pad


def variable_selection(x, w1, b1, w2, b2, w3, b3, *,
                       compute_dtype=jnp.float32, target_lanes=2048):
    """Forward pass of Variable_selection (eval mode).

    x : (B, window_size, N) float32
    w1, w2 : (d_model, window_size); b1, b2 : (d_model, 1)
    w3 : (1, d_model);               b3 : (1, 1)
    compute_dtype: jnp.bfloat16 runs the GLU matmul on the bf16 MXU path (f32 accumulate);
                   recommended on v6e/v7x, ~1e-3-level output difference vs f32.
    Returns softmax variable-selection weights of shape (B, N).
    """
    B, W, N = x.shape
    D = w1.shape[0]
    del b3  # constant shift of every logit -> cancels exactly under the softmax

    bt, B_pad = _choose_tiling(B, N, target_lanes)
    num_tiles = B_pad // bt
    L = bt * N

    if B_pad != B:
        # Dummy batches: zero inputs -> a harmless uniform softmax, sliced off at the end.
        x = jnp.pad(x, ((0, B_pad - B), (0, 0), (0, 0)))

    # Fold batch onto the lane axis: (B_pad, W, N) -> (W, B_pad*N).
    # TODO(synk): on v5e this transpose is an extra HBM round trip of x; a producer that
    # can hand x over already laid out as (W, B*N) should pass it through directly.
    xf = jnp.transpose(x, (1, 0, 2)).reshape(W, B_pad * N)

    # Fuse fc1/fc2 into one weight/bias: the GLU becomes a single MXU pass, half the DMAs.
    w12 = jnp.concatenate([w1, w2], axis=0)            # (2D, W)
    b12 = jnp.concatenate([b1, b2], axis=0)            # (2D, 1)

    if compute_dtype == jnp.bfloat16:
        xf = xf.astype(jnp.bfloat16)
        w12 = w12.astype(jnp.bfloat16)

    # One-hot segment matrix for one tile (and its transpose): seg[b, j] = 1 iff lane j
    # belongs to batch b. Constant index_map -> DMA'd once, VMEM-resident across steps.
    eye = jnp.eye(bt, dtype=jnp.float32)
    seg = jnp.repeat(eye, N, axis=1)                    # (bt, L)
    seg_t = jnp.repeat(eye, N, axis=0)                  # (L, bt)

    out3 = pl.pallas_call(
        _vs_kernel,
        # Output kept 3-D (num_tiles, 1, L) so the block's second-minor dim equals the
        # full dim while the lane axis stays a dense multiple-of-128 slab (unmasked vst).
        out_shape=jax.ShapeDtypeStruct((num_tiles, 1, L), jnp.float32),
        grid=(num_tiles,),
        in_specs=[
            pl.BlockSpec((W, L), lambda t: (0, t)),          # x slab: bt batches per step
            pl.BlockSpec((2 * D, W), lambda t: (0, 0)),      # fused fc1/fc2 weight
            pl.BlockSpec((2 * D, 1), lambda t: (0, 0)),      # fused fc1/fc2 bias
            pl.BlockSpec((1, D), lambda t: (0, 0)),          # weight_ffc weight
            pl.BlockSpec((bt, L), lambda t: (0, 0)),         # segment one-hot matrix
            pl.BlockSpec((L, bt), lambda t: (0, 0)),         # its transpose
        ],
        out_specs=pl.BlockSpec((1, 1, L), lambda t: (t, 0, 0)),
        compiler_params=pltpu.CompilerParams(dimension_semantics=("parallel",)),
    )(xf, w12, b12, w3, seg, seg_t)

    # (num_tiles, 1, bt*N) -> (B_pad, N) is a pure metadata reshape; drop dummy batches.
    return out3.reshape(B_pad, N)[:B]


def _reference(x, w1, b1, w2, b2, w3, b3):
    """Pure-JAX reference matching the PyTorch forward (eval mode)."""
    xp = jnp.transpose(x, (0, 2, 1))                                   # (B, N, W)
    h = jax.nn.sigmoid(xp @ w1.T + b1[:, 0]) * (xp @ w2.T + b2[:, 0])  # (B, N, D)
    logits = (h @ w3.T)[..., 0] + b3[0, 0]                             # (B, N)
    return jax.nn.softmax(logits, axis=1)


def _make_inputs(key, B, W, N, D):
    kx, k1, k2, k3, k4, k5, k6 = jax.random.split(key, 7)
    x = jax.random.normal(kx, (B, W, N), dtype=jnp.float32)
    # PyTorch Linear weight layout: (out_features, in_features).
    w1 = jax.random.normal(k1, (D, W), dtype=jnp.float32) * 0.1   # gate.fc1.weight
    b1 = jax.random.normal(k2, (D, 1), dtype=jnp.float32) * 0.1   # gate.fc1.bias
    w2 = jax.random.normal(k3, (D, W), dtype=jnp.float32) * 0.1   # gate.fc2.weight
    b2 = jax.random.normal(k4, (D, 1), dtype=jnp.float32) * 0.1   # gate.fc2.bias
    w3 = jax.random.normal(k5, (1, D), dtype=jnp.float32) * 0.1   # weight_ffc.weight
    b3 = jax.random.normal(k6, (1, 1), dtype=jnp.float32) * 0.1   # weight_ffc.bias
    return x, w1, b1, w2, b2, w3, b3


if __name__ == "__main__":
    key = jax.random.PRNGKey(0)
    k_small, k_big = jax.random.split(key)

    # Case 1: module-sized demo (d_model=32, window=8, 16 variables, batch=2), f32 path.
    args = _make_inputs(k_small, 2, 8, 16, 32)
    out = jax.block_until_ready(variable_selection(*args))
    ref = _reference(*args)
    assert out.shape == (2, 16)
    assert jnp.allclose(out, ref, atol=1e-4, rtol=1e-4), "f32 mismatch vs reference"
    assert jnp.allclose(jnp.sum(out, axis=1), jnp.ones((2,)), atol=1e-4)

    # Case 2: larger batch exercising the multi-tile even split and the bf16 MXU path.
    args = _make_inputs(k_big, 64, 8, 16, 32)
    out = jax.block_until_ready(variable_selection(*args, compute_dtype=jnp.bfloat16))
    ref = _reference(*args)
    assert out.shape == (64, 16)
    assert jnp.allclose(out, ref, atol=5e-3, rtol=5e-3), "bf16 mismatch vs reference"
    assert jnp.allclose(jnp.sum(out, axis=1), jnp.ones((64,)), atol=1e-3)

    print("KERNEL_OK")
</pallas_src>

<mosaic_0001>
module attributes {stable_mosaic.version = 11 : i64} {
  func.func @_vs_kernel(%arg0: i32, %arg1: memref<8x32xf32, #tpu.memory_space<vmem>>, %arg2: memref<64x8xf32, #tpu.memory_space<vmem>>, %arg3: memref<64x1xf32, #tpu.memory_space<vmem>>, %arg4: memref<1x32xf32, #tpu.memory_space<vmem>>, %arg5: memref<2x32xf32, #tpu.memory_space<vmem>>, %arg6: memref<32x2xf32, #tpu.memory_space<vmem>>, %arg7: memref<1x1x32xf32, #tpu.memory_space<vmem>>) attributes {dimension_semantics = [#tpu.dimension_semantics<parallel>], iteration_bounds = array<i64: 1>, scalar_prefetch = 0 : i64, scratch_operands = 0 : i64, tpu.core_type = #tpu.core_type<tc>, window_params = [{transform_indices = @transform_0, window_bounds = array<i64: 8, 32>}, {pipeline_mode = #tpu.pipeline_mode<synchronous>, transform_indices = @transform_1, window_bounds = array<i64: 64, 8>}, {pipeline_mode = #tpu.pipeline_mode<synchronous>, transform_indices = @transform_2, window_bounds = array<i64: 64, 1>}, {pipeline_mode = #tpu.pipeline_mode<synchronous>, transform_indices = @transform_3, window_bounds = array<i64: 1, 32>}, {pipeline_mode = #tpu.pipeline_mode<synchronous>, transform_indices = @transform_4, window_bounds = array<i64: 2, 32>}, {pipeline_mode = #tpu.pipeline_mode<synchronous>, transform_indices = @transform_5, window_bounds = array<i64: 32, 2>}, {transform_indices = @transform_6, window_bounds = array<i64: 1, 1, 32>}]} {
    %c0 = arith.constant 0 : index
    %c0_0 = arith.constant 0 : index
    %0 = vector.load %arg1[%c0, %c0_0] : memref<8x32xf32, #tpu.memory_space<vmem>>, vector<8x32xf32>
    %c0_1 = arith.constant 0 : index
    %c0_2 = arith.constant 0 : index
    %1 = vector.load %arg2[%c0_1, %c0_2] : memref<64x8xf32, #tpu.memory_space<vmem>>, vector<64x8xf32>
    %cst = arith.constant dense<0.000000e+00> : vector<64x32xf32>
    %2 = tpu.matmul %1, %0, %cst {dimension_numbers = #tpu.dot_dimension_numbers<[1], [0], [0], [1], [0, 0, 1, 1], [], []>} : vector<64x8xf32>, vector<8x32xf32>, vector<64x32xf32> -> vector<64x32xf32>
    %c0_3 = arith.constant 0 : index
    %c0_4 = arith.constant 0 : index
    %3 = vector.load %arg3[%c0_3, %c0_4] : memref<64x1xf32, #tpu.memory_space<vmem>>, vector<64x1xf32>
    %4 = vector.broadcast %3 : vector<64x1xf32> to vector<64x32xf32>
    %5 = arith.addf %2, %4 : vector<64x32xf32>
    %6 = vector.extract_strided_slice %5 {offsets = [0, 0], sizes = [32, 32], strides = [1, 1]} : vector<64x32xf32> to vector<32x32xf32>
    %7 = arith.negf %6 : vector<32x32xf32>
    %8 = math.exp %7 : vector<32x32xf32>
    %cst_5 = arith.constant 1.000000e+00 : f32
    %9 = vector.broadcast %cst_5 : f32 to vector<32x32xf32>
    %10 = arith.addf %9, %8 : vector<32x32xf32>
    %11 = arith.divf %9, %10 : vector<32x32xf32>
    %12 = vector.extract_strided_slice %5 {offsets = [32, 0], sizes = [32, 32], strides = [1, 1]} : vector<64x32xf32> to vector<32x32xf32>
    %13 = arith.mulf %11, %12 : vector<32x32xf32>
    %c0_6 = arith.constant 0 : index
    %c0_7 = arith.constant 0 : index
    %14 = vector.load %arg4[%c0_6, %c0_7] : memref<1x32xf32, #tpu.memory_space<vmem>>, vector<1x32xf32>
    %cst_8 = arith.constant dense<0.000000e+00> : vector<1x32xf32>
    %15 = tpu.matmul %14, %13, %cst_8 {dimension_numbers = #tpu.dot_dimension_numbers<[1], [0], [0], [1], [0, 0, 1, 1], [], []>} : vector<1x32xf32>, vector<32x32xf32>, vector<1x32xf32> -> vector<1x32xf32>
    %c0_9 = arith.constant 0 : index
    %c0_10 = arith.constant 0 : index
    %16 = vector.load %arg5[%c0_9, %c0_10] : memref<2x32xf32, #tpu.memory_space<vmem>>, vector<2x32xf32>
    %cst_11 = arith.constant 0.000000e+00 : f32
    %17 = vector.broadcast %cst_11 : f32 to vector<2x32xf32>
    %18 = arith.cmpf one, %16, %17 : vector<2x32xf32>
    %cst_12 = arith.constant -1.000000e+30 : f32
    %19 = vector.shape_cast %15 : vector<1x32xf32> to vector<1x32xf32>
    %20 = vector.broadcast %19 : vector<1x32xf32> to vector<2x32xf32>
    %21 = vector.broadcast %cst_12 : f32 to vector<2x32xf32>
    %22 = arith.select %18, %20, %21 : vector<2x32xi1>, vector<2x32xf32>
    %cst_13 = arith.constant dense<0xFF800000> : vector<2xf32>
    %23 = vector.multi_reduction <maximumf>, %22, %cst_13 [1] : vector<2x32xf32> to vector<2xf32>
    %24 = vector.shape_cast %23 : vector<2xf32> to vector<2x1xf32>
    %25 = vector.broadcast %24 : vector<2x1xf32> to vector<2x32xf32>
    %26 = arith.subf %22, %25 : vector<2x32xf32>
    %cst_14 = arith.constant dense<0xFF800000> : vector<32xf32>
    %27 = vector.multi_reduction <maximumf>, %26, %cst_14 [0] : vector<2x32xf32> to vector<32xf32>
    %28 = vector.shape_cast %27 : vector<32xf32> to vector<1x32xf32>
    %29 = math.exp %28 : vector<1x32xf32>
    %c0_15 = arith.constant 0 : index
    %c0_16 = arith.constant 0 : index
    %30 = vector.load %arg6[%c0_15, %c0_16] : memref<32x2xf32, #tpu.memory_space<vmem>>, vector<32x2xf32>
    %cst_17 = arith.constant dense<0.000000e+00> : vector<1x2xf32>
    %31 = tpu.matmul %29, %30, %cst_17 {dimension_numbers = #tpu.dot_dimension_numbers<[1], [0], [0], [1], [0, 0, 1, 1], [], []>} : vector<1x32xf32>, vector<32x2xf32>, vector<1x2xf32> -> vector<1x2xf32>
    %cst_18 = arith.constant dense<0.000000e+00> : vector<1x32xf32>
    %32 = tpu.matmul %31, %16, %cst_18 {dimension_numbers = #tpu.dot_dimension_numbers<[1], [0], [0], [1], [0, 0, 1, 1], [], []>} : vector<1x2xf32>, vector<2x32xf32>, vector<1x32xf32> -> vector<1x32xf32>
    %33 = tpu.reciprocal %32 {approx = true} : vector<1x32xf32> -> vector<1x32xf32>
    %34 = arith.mulf %32, %33 : vector<1x32xf32>
    %cst_19 = arith.constant 2.000000e+00 : f32
    %35 = vector.broadcast %cst_19 : f32 to vector<1x32xf32>
    %36 = arith.subf %35, %34 : vector<1x32xf32>
    %37 = arith.mulf %33, %36 : vector<1x32xf32>
    %38 = arith.mulf %29, %37 : vector<1x32xf32>
    %c0_20 = arith.constant 0 : index
    %c0_21 = arith.constant 0 : index
    %c0_22 = arith.constant 0 : index
    %39 = vector.load %arg7[%c0_20, %c0_21, %c0_22] : memref<1x1x32xf32, #tpu.memory_space<vmem>>, vector<1x1x32xf32>
    %40 = vector.shape_cast %39 : vector<1x1x32xf32> to vector<1x32xf32>
    %41 = vector.shape_cast %38 : vector<1x32xf32> to vector<1x1x32xf32>
    tpu.vector_store %arg7[%c0_20, %c0_21, %c0_22], %41 {strides = array<i32>} : memref<1x1x32xf32, #tpu.memory_space<vmem>>, vector<1x1x32xf32>,
    return
  }
  func.func @transform_0(%arg0: i32) -> (i32, i32) {
    %c0_i32 = arith.constant 0 : i32
    %c0_i32_0 = arith.constant 0 : i32
    return %c0_i32, %arg0 : i32, i32
  }
  func.func @transform_1(%arg0: i32) -> (i32, i32) {
    %c0_i32 = arith.constant 0 : i32
    %c0_i32_0 = arith.constant 0 : i32
    %c0_i32_1 = arith.constant 0 : i32
    return %c0_i32, %c0_i32_0 : i32, i32
  }
  func.func @transform_2(%arg0: i32) -> (i32, i32) {
    %c0_i32 = arith.constant 0 : i32
    %c0_i32_0 = arith.constant 0 : i32
    %c0_i32_1 = arith.constant 0 : i32
    return %c0_i32, %c0_i32_0 : i32, i32
  }
  func.func @transform_3(%arg0: i32) -> (i32, i32) {
    %c0_i32 = arith.constant 0 : i32
    %c0_i32_0 = arith.constant 0 : i32
    %c0_i32_1 = arith.constant 0 : i32
    return %c0_i32, %c0_i32_0 : i32, i32
  }
  func.func @transform_4(%arg0: i32) -> (i32, i32) {
    %c0_i32 = arith.constant 0 : i32
    %c0_i32_0 = arith.constant 0 : i32
    %c0_i32_1 = arith.constant 0 : i32
    return %c0_i32, %c0_i32_0 : i32, i32
  }
  func.func @transform_5(%arg0: i32) -> (i32, i32) {
    %c0_i32 = arith.constant 0 : i32
    %c0_i32_0 = arith.constant 0 : i32
    %c0_i32_1 = arith.constant 0 : i32
    return %c0_i32, %c0_i32_0 : i32, i32
  }
  func.func @transform_6(%arg0: i32) -> (i32, i32, i32) {
    %c0_i32 = arith.constant 0 : i32
    %c0_i32_0 = arith.constant 0 : i32
    %c0_i32_1 = arith.constant 0 : i32
    return %arg0, %c0_i32, %c0_i32_0 : i32, i32, i32
  }
}

</mosaic_0001>

<llo_original>
// kernel: tpu_custom_call.1
$region0: #{tpu_custom_call.1}
  #allocation0 [shape = 'u32[]', space=smem, size = 0x4, offset = 0x4, fixed_abs, tag = 'smem constant byte address 0x4 - core index']
  #allocation1 [shape = 'u32[144,128]{1,0:T(1,128)}', space=vmem, size = 0x12000, scoped, tag = 'internal scratch']
  %s0 = inlined_call_operand.vmem [shape: f32[8,32], index: 0, kind: input, shape index: {}]
  %s1 = inlined_call_operand.vmem [shape: f32[64,8], index: 1, kind: input, shape index: {}]
  %s2 = inlined_call_operand.vmem [shape: f32[64,1], index: 2, kind: input, shape index: {}]
  %s3 = inlined_call_operand.vmem [shape: f32[1,32], index: 3, kind: input, shape index: {}]
  %s4 = inlined_call_operand.vmem [shape: f32[2,32], index: 4, kind: input, shape index: {}]
  %s5 = inlined_call_operand.vmem [shape: f32[32,2], index: 5, kind: input, shape index: {}]
  %s6 = inlined_call_operand.hbm [shape: f32[1,1,32], index: 6, kind: output, shape index: {}]
  %s7 = sld [smem:[#allocation0]]
  $region34: #{tpu_custom_call.1} parent=0
    _
  %s9 = ssub.s32 1, %s7
  %s10 = scalar_select 0, %s9, %s7
  $region1: #{tpu_custom_call.1} parent=0
    #allocation2 [shape = 'u8[512]{0}', space=vmem, size = 0x400, scoped, tag = 'output window, operand 0, single buffered']
    #allocation3 [shape = 's32[1]{0}', space=sflag, size = 0x4, scoped, tag = 'scoped memory for tpu_custom_call.1']
    %11 = vsyncpa [#allocation3], 0
    // Predicated region
    $region2: #{tpu_custom_call.1} parent=1 // pred_check
      _
    $region3: #{tpu_custom_call.1} parent=1 // pred_check_branch
      %13 = sbr.rel (0) target = $region5
    $region4: #{tpu_custom_call.1} parent=1 // pred_region
      _
    $region5: #{tpu_custom_call.1} parent=1 // pred_fallthru
      _
    // Predicated region
    $region6: #{tpu_custom_call.1} parent=1 // pred_check
      _
    $region7: #{tpu_custom_call.1} parent=1 // pred_check_branch
      %15 = sbr.rel (0) target = $region9
    $region8: #{tpu_custom_call.1} parent=1 // pred_region
      _
    $region9: #{tpu_custom_call.1} parent=1 // pred_fallthru
      _
    // Predicated region
    $region10: #{tpu_custom_call.1} parent=1 // pred_check
      _
    $region11: #{tpu_custom_call.1} parent=1 // pred_check_branch
      %17 = sbr.rel (0) target = $region13
    $region12: #{tpu_custom_call.1} parent=1 // pred_region
      _
    $region13: #{tpu_custom_call.1} parent=1 // pred_fallthru
      _
    // Predicated region
    $region14: #{tpu_custom_call.1} parent=1 // pred_check
      _
    $region15: #{tpu_custom_call.1} parent=1 // pred_check_branch
      %19 = sbr.rel (0) target = $region17
    $region16: #{tpu_custom_call.1} parent=1 // pred_region
      _
    $region17: #{tpu_custom_call.1} parent=1 // pred_fallthru
      _
    // Predicated region
    $region18: #{tpu_custom_call.1} parent=1 // pred_check
      _
    $region19: #{tpu_custom_call.1} parent=1 // pred_check_branch
      %21 = sbr.rel (0) target = $region21
    $region20: #{tpu_custom_call.1} parent=1 // pred_region
      _
    $region21: #{tpu_custom_call.1} parent=1 // pred_fallthru
      _
    // Predicated region
    $region22: #{tpu_custom_call.1} parent=1 // pred_check
      _
    $region23: #{tpu_custom_call.1} parent=1 // pred_check_branch
      %23 = sbr.rel (0) target = $region25
    $region24: #{tpu_custom_call.1} parent=1 // pred_region
      _
    $region25: #{tpu_custom_call.1} parent=1 // pred_fallthru
      _
    %v24 = vld [vmem:[%s0] sm:$0xff]
    %v25 = vld [vmem:[%s1] sm:$0xff]
    %v26 = vld [vmem:[%s1 + $0x8] sm:$0xff]
    %v27 = vld [vmem:[%s1 + $0x10] sm:$0xff]
    %v28 = vld [vmem:[%s1 + $0x18] sm:$0xff]
    %v29 = vld [vmem:[%s1 + $0x20] sm:$0xff]
    %v30 = vld [vmem:[%s1 + $0x28] sm:$0xff]
    %v31 = vld [vmem:[%s1 + $0x30] sm:$0xff]
    %v32 = vld [vmem:[%s1 + $0x38] sm:$0xff]
    %v33 = vld [vmem:[%s2] sm:$0xff]
    %v34 = vld [vmem:[%s2 + $0x8] sm:$0xff]
    %v35 = vld [vmem:[%s2 + $0x10] sm:$0xff]
    %v36 = vld [vmem:[%s2 + $0x18] sm:$0xff]
    %v37 = vld [vmem:[%s2 + $0x20] sm:$0xff]
    %v38 = vld [vmem:[%s2 + $0x28] sm:$0xff]
    %v39 = vld [vmem:[%s2 + $0x30] sm:$0xff]
    %v40 = vld [vmem:[%s2 + $0x38] sm:$0xff]
    %42 = vset.pattern.permute.xlu0 0
    %43 = vperm.xlu0 %42, %v33
    %v44 = vpop.permute.xlu0 %43
    %47 = vset.pattern.permute.xlu0 0
    %48 = vperm.xlu0 %47, %v34
    %v49 = vpop.permute.xlu0 %48
    %52 = vset.pattern.permute.xlu0 0
    %53 = vperm.xlu0 %52, %v35
    %v54 = vpop.permute.xlu0 %53
    %57 = vset.pattern.permute.xlu0 0
    %58 = vperm.xlu0 %57, %v36
    %v59 = vpop.permute.xlu0 %58
    %62 = vset.pattern.permute.xlu0 0
    %63 = vperm.xlu0 %62, %v37
    %v64 = vpop.permute.xlu0 %63
    %67 = vset.pattern.permute.xlu0 0
    %68 = vperm.xlu0 %67, %v38
    %v69 = vpop.permute.xlu0 %68
    %72 = vset.pattern.permute.xlu0 0
    %73 = vperm.xlu0 %72, %v39
    %v74 = vpop.permute.xlu0 %73
    %77 = vset.pattern.permute.xlu0 0
    %78 = vperm.xlu0 %77, %v40
    %v79 = vpop.permute.xlu0 %78
    %vm81 = vcmask 64512
    %v83 = vsel %vm81, %v25, 0
    %v86 = vsel %vm81, %v26, 0
    %v89 = vsel %vm81, %v27, 0
    %v92 = vsel %vm81, %v28, 0
    %v95 = vsel %vm81, %v29, 0
    %v98 = vsel %vm81, %v30, 0
    %v101 = vsel %vm81, %v31, 0
    %v104 = vsel %vm81, %v32, 0
    %106 = vmatprep.subr.mxu0 0.0
    %107 = vmatpush1.msra.mxu0 %v24
    %108 = vmatprep.subr.mxu0 0.0
    %109 = vmatpush1.msra.mxu0 0.0
    %110 = vmatprep.subr.mxu0 0.0
    %111 = vmatpush1.msra.mxu0 0.0
    %112 = vmatprep.subr.mxu0 0.0
    %113 = vmatpush1.msra.mxu0 0.0
    %114 = vmatprep.subr.mxu0 0.0
    %115 = vmatpush1.msra.mxu0 0.0
    %116 = vmatprep.subr.mxu0 0.0
    %117 = vmatpush1.msra.mxu0 0.0
    %118 = vmatprep.subr.mxu0 0.0
    %119 = vmatpush1.msra.mxu0 0.0
    %120 = vmatprep.subr.mxu0 0.0
    %121 = vmatpush1.msra.mxu0 0.0
    %122 = vmatprep.subr.mxu0 0.0
    %123 = vmatpush1.msra.mxu0 0.0
    %124 = vmatprep.subr.mxu0 0.0
    %125 = vmatpush1.msra.mxu0 0.0
    %126 = vmatprep.subr.mxu0 0.0
    %127 = vmatpush1.msra.mxu0 0.0
    %128 = vmatprep.subr.mxu0 0.0
    %129 = vmatpush1.msra.mxu0 0.0
    %130 = vmatprep.subr.mxu0 0.0
    %131 = vmatpush1.msra.mxu0 0.0
    %132 = vmatprep.subr.mxu0 0.0
    %133 = vmatpush1.msra.mxu0 0.0
    %134 = vmatprep.subr.mxu0 0.0
    %135 = vmatpush1.msra.mxu0 0.0
    %136 = vmatprep.subr.mxu0 0.0
    %137 = vmatpush1.msra.mxu0 0.0
    %138 = vmatprep.subr.mxu0 0.0
    %139 = vmatpush1.msra.mxu0 0.0
    %140 = vmatprep.subr.mxu0 0.0
    %141 = vmatpush1.msra.mxu0 0.0
    %142 = vmatprep.subr.mxu0 0.0
    %143 = vmatpush1.msra.mxu0 0.0
    %144 = vmatprep.subr.mxu0 0.0
    %145 = vmatpush1.msra.mxu0 0.0
    %146 = vmatprep.subr.mxu0 0.0
    %147 = vmatpush1.msra.mxu0 0.0
    %148 = vmatprep.subr.mxu0 0.0
    %149 = vmatpush1.msra.mxu0 0.0
    %150 = vmatprep.subr.mxu0 0.0
    %151 = vmatpush1.msra.mxu0 0.0
    %152 = vmatprep.subr.mxu0 0.0
    %153 = vmatpush1.msra.mxu0 0.0
    %154 = vmatprep.subr.mxu0 0.0
    %155 = vmatpush1.msra.mxu0 0.0
    %156 = vmatprep.subr.mxu0 0.0
    %157 = vmatpush1.msra.mxu0 0.0
    %158 = vmatprep.subr.mxu0 0.0
    %159 = vmatpush1.msra.mxu0 0.0
    %160 = vmatprep.subr.mxu0 0.0
    %161 = vmatpush1.msra.mxu0 0.0
    %162 = vmatprep.subr.mxu0 0.0
    %163 = vmatpush1.msra.mxu0 0.0
    %164 = vmatprep.subr.mxu0 0.0
    %165 = vmatpush1.msra.mxu0 0.0
    %166 = vmatprep.subr.mxu0 0.0
    %167 = vmatpush1.msra.mxu0 0.0
    %168 = vmatprep.subr.mxu0 0.0
    %169 = vmatpush1.msra.mxu0 0.0
    %170 = vmatprep.mubr.f32.mxu0 0.0
    %171 = vmatmul.mubr.f32.gmra.mrb[0].mxu0 %v83
    %v172 = vpop.f32.mrb[0].mxu0
    %v173 = vadd.f32 %v44, %v172
    %v174 = vpop.f32.mrb[0].mxu0
    %175 = vmatprep.mubr.f32.mxu0 0.0
    %176 = vmatmul.mubr.f32.gmra.mrb[0].mxu0 %v86
    %v177 = vpop.f32.mrb[0].mxu0
    %v178 = vadd.f32 %v49, %v177
    %v179 = vpop.f32.mrb[0].mxu0
    %180 = vmatprep.mubr.f32.mxu0 0.0
    %181 = vmatmul.mubr.f32.gmra.mrb[0].mxu0 %v89
    %v182 = vpop.f32.mrb[0].mxu0
    %v183 = vadd.f32 %v54, %v182
    %v184 = vpop.f32.mrb[0].mxu0
    %185 = vmatprep.mubr.f32.mxu0 0.0
    %186 = vmatmul.mubr.f32.gmra.mrb[0].mxu0 %v92
    %v187 = vpop.f32.mrb[0].mxu0
    %v188 = vadd.f32 %v59, %v187
    %v189 = vpop.f32.mrb[0].mxu0
    %190 = vmatprep.mubr.f32.mxu0 0.0
    %191 = vmatmul.mubr.f32.gmra.mrb[0].mxu0 %v95
    %v192 = vpop.f32.mrb[0].mxu0
    %v193 = vadd.f32 %v64, %v192
    %v194 = vpop.f32.mrb[0].mxu0
    %195 = vmatprep.mubr.f32.mxu0 0.0
    %196 = vmatmul.mubr.f32.gmra.mrb[0].mxu0 %v98
    %v197 = vpop.f32.mrb[0].mxu0
    %v198 = vadd.f32 %v69, %v197
    %v199 = vpop.f32.mrb[0].mxu0
    %200 = vmatprep.mubr.f32.mxu0 0.0
    %201 = vmatmul.mubr.f32.gmra.mrb[0].mxu0 %v101
    %v202 = vpop.f32.mrb[0].mxu0
    %v203 = vadd.f32 %v74, %v202
    %v204 = vpop.f32.mrb[0].mxu0
    %205 = vmatprep.mubr.f32.mxu0 0.0
    %206 = vmatmul.mubr.f32.gmra.mrb[0].mxu0 %v104
    %v207 = vpop.f32.mrb[0].mxu0
    %v208 = vadd.f32 %v79, %v207
    %v209 = vpop.f32.mrb[0].mxu0
    %210 = vdwg.mxu0
    %v211 = vxor.u32 %v173, 2147483648
    %v212 = vxor.u32 %v178, 2147483648
    %v213 = vxor.u32 %v183, 2147483648
    %v214 = vxor.u32 %v188, 2147483648
    %v215 = vmul.f32 %v211, 1.442695
    %v216 = vpow.pop %v215
    %v217 = vmul.f32 %v212, 1.442695
    %v218 = vpow.pop %v217
    %v219 = vmul.f32 %v213, 1.442695
    %v220 = vpow.pop %v219
    %v221 = vmul.f32 %v214, 1.442695
    %v222 = vpow.pop %v221
    %v223 = vadd.f32 %v216, 1.0
    %v224 = vadd.f32 %v218, 1.0
    %v225 = vadd.f32 %v220, 1.0
    %v226 = vadd.f32 %v222, 1.0
    %v227 = vrcp.pop %v223
    %v228 = vmul.f32 1.0, %v227
    %v229 = vrcp.pop %v224
    %v230 = vmul.f32 1.0, %v229
    %v231 = vrcp.pop %v225
    %v232 = vmul.f32 1.0, %v231
    %v233 = vrcp.pop %v226
    %v234 = vmul.f32 1.0, %v233
    %v235 = vmul.f32 %v228, %v193
    %v236 = vmul.f32 %v230, %v198
    %v237 = vmul.f32 %v232, %v203
    %v238 = vmul.f32 %v234, %v208
    %v239 = vld [vmem:[%s3] sm:$0x1]
    %vm240 = vcmask 261120
    %v242 = vsel %vm240, %v239, 0
    %244 = vmatprep.subr.mxu0 0.0
    %245 = vmatpush1.msra.mxu0 %v235
    %246 = vmatprep.subr.mxu0 0.0
    %247 = vmatpush1.msra.mxu0 %v236
    %248 = vmatprep.subr.mxu0 0.0
    %249 = vmatpush1.msra.mxu0 %v237
    %250 = vmatprep.subr.mxu0 0.0
    %251 = vmatpush1.msra.mxu0 %v238
    %252 = vmatprep.subr.mxu0 0.0
    %253 = vmatpush1.msra.mxu0 0.0
    %254 = vmatprep.subr.mxu0 0.0
    %255 = vmatpush1.msra.mxu0 0.0
    %256 = vmatprep.subr.mxu0 0.0
    %257 = vmatpush1.msra.mxu0 0.0
    %258 = vmatprep.subr.mxu0 0.0
    %259 = vmatpush1.msra.mxu0 0.0
    %260 = vmatprep.subr.mxu0 0.0
    %261 = vmatpush1.msra.mxu0 0.0
    %262 = vmatprep.subr.mxu0 0.0
    %263 = vmatpush1.msra.mxu0 0.0
    %264 = vmatprep.subr.mxu0 0.0
    %265 = vmatpush1.msra.mxu0 0.0
    %266 = vmatprep.subr.mxu0 0.0
    %267 = vmatpush1.msra.mxu0 0.0
    %268 = vmatprep.subr.mxu0 0.0
    %269 = vmatpush1.msra.mxu0 0.0
    %270 = vmatprep.subr.mxu0 0.0
    %271 = vmatpush1.msra.mxu0 0.0
    %272 = vmatprep.subr.mxu0 0.0
    %273 = vmatpush1.msra.mxu0 0.0
    %274 = vmatprep.subr.mxu0 0.0
    %275 = vmatpush1.msra.mxu0 0.0
    %276 = vmatprep.subr.mxu0 0.0
    %277 = vmatpush1.msra.mxu0 0.0
    %278 = vmatprep.subr.mxu0 0.0
    %279 = vmatpush1.msra.mxu0 0.0
    %280 = vmatprep.subr.mxu0 0.0
    %281 = vmatpush1.msra.mxu0 0.0
    %282 = vmatprep.subr.mxu0 0.0
    %283 = vmatpush1.msra.mxu0 0.0
    %284 = vmatprep.subr.mxu0 0.0
    %285 = vmatpush1.msra.mxu0 0.0
    %286 = vmatprep.subr.mxu0 0.0
    %287 = vmatpush1.msra.mxu0 0.0
    %288 = vmatprep.subr.mxu0 0.0
    %289 = vmatpush1.msra.mxu0 0.0
    %290 = vmatprep.subr.mxu0 0.0
    %291 = vmatpush1.msra.mxu0 0.0
    %292 = vmatprep.subr.mxu0 0.0
    %293 = vmatpush1.msra.mxu0 0.0
    %294 = vmatprep.subr.mxu0 0.0
    %295 = vmatpush1.msra.mxu0 0.0
    %296 = vmatprep.subr.mxu0 0.0
    %297 = vmatpush1.msra.mxu0 0.0
    %298 = vmatprep.subr.mxu0 0.0
    %299 = vmatpush1.msra.mxu0 0.0
    %300 = vmatprep.subr.mxu0 0.0
    %301 = vmatpush1.msra.mxu0 0.0
    %302 = vmatprep.subr.mxu0 0.0
    %303 = vmatpush1.msra.mxu0 0.0
    %304 = vmatprep.subr.mxu0 0.0
    %305 = vmatpush1.msra.mxu0 0.0
    %306 = vmatprep.subr.mxu0 0.0
    %307 = vmatpush1.msra.mxu0 0.0
    %308 = vmatprep.mubr.f32.mxu0 0.0
    %309 = vmatmul.mubr.f32.gmra.mrb[0].mxu0 %v242
    %v310 = vpop.f32.mrb[0].mxu0
    %v311 = vadd.f32 0.0, %v310
    %v312 = vpop.f32.mrb[0].mxu0
    %313 = vdwg.mxu0
    %v314 = vld [vmem:[%s4] sm:$0x3]
    %vm315 = vcmp.ne.f32.partialorder %v314, 0.0
    %v316 = vlaneseq
    %v317 = vshrl.u32 %v316, 7
    %v318 = vsub.s32 0, %v317
    %v319 = vrot.slane %v311, %v318
    %v320 = vsel %vm315, %v319, -1e+30
    %vm321 = vcmask 254976
    %v322 = vsel %vm321, %v320, -inf
    %323 = vmax.xlane.f32.xlu0 %v322
    %v324 = vpop.xlane.xlu0 %323
    %v325 = vsub.f32 %v320, %v324
    %v326 = vsel %vm321, %v325, -inf
    %v327 = vrot.slane %v326, 4
    %v328 = vmax.f32 %v326, %v327
    %v329 = vrot.slane %v328, 2
    %v330 = vmax.f32 %v328, %v329
    %v331 = vrot.slane %v330, 1
    %v332 = vmax.f32 %v330, %v331
    %v333 = vmul.f32 %v332, 1.442695
    %v334 = vpow.pop %v333
    %v335 = vld [vmem:[%s5] sm:$0xff]
    %v336 = vld [vmem:[%s5 + $0x8] sm:$0xff]
    %v337 = vld [vmem:[%s5 + $0x10] sm:$0xff]
    %v338 = vld [vmem:[%s5 + $0x18] sm:$0xff]
    %v340 = vsel %vm240, %v334, 0
    %342 = vmatprep.subr.mxu0 0.0
    %343 = vmatpush1.msra.mxu0 %v335
    %344 = vmatprep.subr.mxu0 0.0
    %345 = vmatpush1.msra.mxu0 %v336
    %346 = vmatprep.subr.mxu0 0.0
    %347 = vmatpush1.msra.mxu0 %v337
    %348 = vmatprep.subr.mxu0 0.0
    %349 = vmatpush1.msra.mxu0 %v338
    %350 = vmatprep.subr.mxu0 0.0
    %351 = vmatpush1.msra.mxu0 0.0
    %352 = vmatprep.subr.mxu0 0.0
    %353 = vmatpush1.msra.mxu0 0.0
    %354 = vmatprep.subr.mxu0 0.0
    %355 = vmatpush1.msra.mxu0 0.0
    %356 = vmatprep.subr.mxu0 0.0
    %357 = vmatpush1.msra.mxu0 0.0
    %358 = vmatprep.subr.mxu0 0.0
    %359 = vmatpush1.msra.mxu0 0.0
    %360 = vmatprep.subr.mxu0 0.0
    %361 = vmatpush1.msra.mxu0 0.0
    %362 = vmatprep.subr.mxu0 0.0
    %363 = vmatpush1.msra.mxu0 0.0
    %364 = vmatprep.subr.mxu0 0.0
    %365 = vmatpush1.msra.mxu0 0.0
    %366 = vmatprep.subr.mxu0 0.0
    %367 = vmatpush1.msra.mxu0 0.0
    %368 = vmatprep.subr.mxu0 0.0
    %369 = vmatpush1.msra.mxu0 0.0
    %370 = vmatprep.subr.mxu0 0.0
    %371 = vmatpush1.msra.mxu0 0.0
    %372 = vmatprep.subr.mxu0 0.0
    %373 = vmatpush1.msra.mxu0 0.0
    %374 = vmatprep.subr.mxu0 0.0
    %375 = vmatpush1.msra.mxu0 0.0
    %376 = vmatprep.subr.mxu0 0.0
    %377 = vmatpush1.msra.mxu0 0.0
    %378 = vmatprep.subr.mxu0 0.0
    %379 = vmatpush1.msra.mxu0 0.0
    %380 = vmatprep.subr.mxu0 0.0
    %381 = vmatpush1.msra.mxu0 0.0
    %382 = vmatprep.subr.mxu0 0.0
    %383 = vmatpush1.msra.mxu0 0.0
    %384 = vmatprep.subr.mxu0 0.0
    %385 = vmatpush1.msra.mxu0 0.0
    %386 = vmatprep.subr.mxu0 0.0
    %387 = vmatpush1.msra.mxu0 0.0
    %388 = vmatprep.subr.mxu0 0.0
    %389 = vmatpush1.msra.mxu0 0.0
    %390 = vmatprep.subr.mxu0 0.0
    %391 = vmatpush1.msra.mxu0 0.0
    %392 = vmatprep.subr.mxu0 0.0
    %393 = vmatpush1.msra.mxu0 0.0
    %394 = vmatprep.subr.mxu0 0.0
    %395 = vmatpush1.msra.mxu0 0.0
    %396 = vmatprep.subr.mxu0 0.0
    %397 = vmatpush1.msra.mxu0 0.0
    %398 = vmatprep.subr.mxu0 0.0
    %399 = vmatpush1.msra.mxu0 0.0
    %400 = vmatprep.subr.mxu0 0.0
    %401 = vmatpush1.msra.mxu0 0.0
    %402 = vmatprep.subr.mxu0 0.0
    %403 = vmatpush1.msra.mxu0 0.0
    %404 = vmatprep.subr.mxu0 0.0
    %405 = vmatpush1.msra.mxu0 0.0
    %406 = vmatprep.mubr.f32.mxu0 0.0
    %407 = vmatmul.mubr.f32.gmra.mrb[0].mxu0 %v340
    %v408 = vpop.f32.mrb[0].mxu0
    %v409 = vadd.f32 0.0, %v408
    %v410 = vpop.f32.mrb[0].mxu0
    %411 = vdwg.mxu0
    %vm412 = vcmask 15360
    %v414 = vsel %vm412, %v409, 0
    %vm416 = vcmask 1041408
    %v418 = vsel %vm416, %v314, 0
    %420 = vmatprep.subr.mxu0 0.0
    %421 = vmatpush1.msra.mxu0 %v418
    %422 = vmatprep.subr.mxu0 0.0
    %423 = vmatpush1.msra.mxu0 0.0
    %424 = vmatprep.subr.mxu0 0.0
    %425 = vmatpush1.msra.mxu0 0.0
    %426 = vmatprep.subr.mxu0 0.0
    %427 = vmatpush1.msra.mxu0 0.0
    %428 = vmatprep.subr.mxu0 0.0
    %429 = vmatpush1.msra.mxu0 0.0
    %430 = vmatprep.subr.mxu0 0.0
    %431 = vmatpush1.msra.mxu0 0.0
    %432 = vmatprep.subr.mxu0 0.0
    %433 = vmatpush1.msra.mxu0 0.0
    %434 = vmatprep.subr.mxu0 0.0
    %435 = vmatpush1.msra.mxu0 0.0
    %436 = vmatprep.subr.mxu0 0.0
    %437 = vmatpush1.msra.mxu0 0.0
    %438 = vmatprep.subr.mxu0 0.0
    %439 = vmatpush1.msra.mxu0 0.0
    %440 = vmatprep.subr.mxu0 0.0
    %441 = vmatpush1.msra.mxu0 0.0
    %442 = vmatprep.subr.mxu0 0.0
    %443 = vmatpush1.msra.mxu0 0.0
    %444 = vmatprep.subr.mxu0 0.0
    %445 = vmatpush1.msra.mxu0 0.0
    %446 = vmatprep.subr.mxu0 0.0
    %447 = vmatpush1.msra.mxu0 0.0
    %448 = vmatprep.subr.mxu0 0.0
    %449 = vmatpush1.msra.mxu0 0.0
    %450 = vmatprep.subr.mxu0 0.0
    %451 = vmatpush1.msra.mxu0 0.0
    %452 = vmatprep.subr.mxu0 0.0
    %453 = vmatpush1.msra.mxu0 0.0
    %454 = vmatprep.subr.mxu0 0.0
    %455 = vmatpush1.msra.mxu0 0.0
    %456 = vmatprep.subr.mxu0 0.0
    %457 = vmatpush1.msra.mxu0 0.0
    %458 = vmatprep.subr.mxu0 0.0
    %459 = vmatpush1.msra.mxu0 0.0
    %460 = vmatprep.subr.mxu0 0.0
    %461 = vmatpush1.msra.mxu0 0.0
    %462 = vmatprep.subr.mxu0 0.0
    %463 = vmatpush1.msra.mxu0 0.0
    %464 = vmatprep.subr.mxu0 0.0
    %465 = vmatpush1.msra.mxu0 0.0
    %466 = vmatprep.subr.mxu0 0.0
    %467 = vmatpush1.msra.mxu0 0.0
    %468 = vmatprep.subr.mxu0 0.0
    %469 = vmatpush1.msra.mxu0 0.0
    %470 = vmatprep.subr.mxu0 0.0
    %471 = vmatpush1.msra.mxu0 0.0
    %472 = vmatprep.subr.mxu0 0.0
    %473 = vmatpush1.msra.mxu0 0.0
    %474 = vmatprep.subr.mxu0 0.0
    %475 = vmatpush1.msra.mxu0 0.0
    %476 = vmatprep.subr.mxu0 0.0
    %477 = vmatpush1.msra.mxu0 0.0
    %478 = vmatprep.subr.mxu0 0.0
    %479 = vmatpush1.msra.mxu0 0.0
    %480 = vmatprep.subr.mxu0 0.0
    %481 = vmatpush1.msra.mxu0 0.0
    %482 = vmatprep.subr.mxu0 0.0
    %483 = vmatpush1.msra.mxu0 0.0
    %484 = vmatprep.mubr.f32.mxu0 0.0
    %485 = vmatmul.mubr.f32.gmra.mrb[0].mxu0 %v414
    %v486 = vpop.f32.mrb[0].mxu0
    %v487 = vadd.f32 0.0, %v486
    %v488 = vpop.f32.mrb[0].mxu0
    %489 = vdwg.mxu0
    %v490 = vrcp.pop %v487
    %v491 = vmul.f32 %v487, %v490
    %v492 = vsub.f32 2.0, %v491
    %v493 = vmul.f32 %v490, %v492
    %v494 = vmul.f32 %v334, %v493
    %vm495 = vcmask 253952
    %496 = vst.msk [vmem:[#allocation2] sm:$0x1] %vm495, %v494
    // Predicated region
    $region26: #{tpu_custom_call.1} parent=1 // pred_check
      _
    $region27: #{tpu_custom_call.1} parent=1 // pred_check_branch
      %498 = sbr.rel (0) target = $region29
    $region28: #{tpu_custom_call.1} parent=1 // pred_region
      %s500 = ssub.s32 16, 16
      %501 = vsyncadd [#allocation3], %s500
      %s503 = sshll.u32 [#allocation2], 4
      %s504 = int_to_ptr.vmem [resolvable:$true] %s503
      %506 = dma.vmem_to_hbm [thread:$0]  %s504, 16, %s6, [#allocation3]
    $region29: #{tpu_custom_call.1} parent=1 // pred_fallthru
      _
    // Predicated region
    $region30: #{tpu_custom_call.1} parent=1 // pred_check
      _
    $region31: #{tpu_custom_call.1} parent=1 // pred_check_branch
      %508 = sbr.rel (0) target = $region33
    $region32: #{tpu_custom_call.1} parent=1 // pred_region
      %509 = dma.done [#allocation3], 16
    $region33: #{tpu_custom_call.1} parent=1 // pred_fallthru
      _
    %510 = vsyncpa [#allocation3], 1

</llo_original>
